<compile_context>
chip_gen: v7x
topology: tpu7x:2x2x1
jax: 0.10.0
libtpu: 0.0.40
codegen_flags: <defaults>
</compile_context>

<pallas_src>
import functools

import jax
import jax.numpy as jnp
from jax import lax
from jax.experimental import pallas as pl
from jax.experimental.pallas import tpu as pltpu


def _round_up(x, m):
    return ((x + m - 1) // m) * m


def _ce_kernel(x_ref, y_ref, vi_ref, out_ref, num_acc, den_acc, *, weight):
    # x_ref  : VMEM [C, Bt, Tt]   logits, class-major (time lane-dense)
    # y_ref  : VMEM [Bt, Tt] i32  labels
    # vi_ref : VMEM [Bt, 2]  i32  (start, end) valid interval per sample
    # out_ref: VMEM [Bt, 1]  f32  per-sample loss (written on last T tile)
    # num_acc, den_acc: VMEM [Bt, 1] f32 scratch, accumulated over T tiles
    ti = pl.program_id(1)
    n_t = pl.num_programs(1)  # static grid -> plain Python int

    @pl.when(ti == 0)
    def _init():
        num_acc[...] = jnp.zeros_like(num_acc)
        den_acc[...] = jnp.zeros_like(den_acc)

    n_cls = x_ref.shape[0]
    xs = [x_ref[c].astype(jnp.float32) for c in range(n_cls)]  # C x [Bt, Tt]
    y = y_ref[...]                                             # [Bt, Tt] int32
    b_tile, t_tile = y.shape

    # log-sum-exp over the class axis: elementwise across the C dense slabs.
    m = xs[0]
    for c in range(1, n_cls):
        m = jnp.maximum(m, xs[c])
    s = jnp.exp(xs[0] - m)
    for c in range(1, n_cls):
        s = s + jnp.exp(xs[c] - m)
    lse = jnp.log(s) + m                                       # [Bt, Tt]

    # Target-class logit and class weight via per-class select (weights are
    # compile-time constants; no full logp tensor is materialized).
    picked = jnp.zeros_like(m)
    w_y = jnp.zeros_like(m)
    for c in range(n_cls):
        sel = y == c
        picked = jnp.where(sel, xs[c], picked)
        w_y = jnp.where(sel, jnp.float32(weight[c]), w_y)
    nll = lse - picked                                         # [Bt, Tt]

    # Valid-interval mask over the *global* time index: t in [start, end).
    # (Time padding beyond the true T is automatically masked since end <= T.)
    start = vi_ref[:, 0:1]                                     # [Bt, 1]
    end = vi_ref[:, 1:2]                                       # [Bt, 1]
    t_idx = lax.broadcasted_iota(jnp.int32, (b_tile, t_tile), 1) + ti * t_tile
    mask = ((t_idx >= start) & (t_idx < end)).astype(jnp.float32)

    wm = mask * w_y
    num_acc[...] += jnp.sum(wm * nll, axis=1, keepdims=True)   # [Bt, 1]
    den_acc[...] += jnp.sum(wm, axis=1, keepdims=True)         # [Bt, 1]

    @pl.when(ti == n_t - 1)
    def _finalize():
        # Empty intervals (start == end) give 0/0 = NaN, matching PyTorch
        # cross_entropy on an empty slice; padded batch rows are sliced off
        # in the wrapper before the mean.
        out_ref[...] = num_acc[...] / den_acc[...]


def valid_interval_multi_pred_loss(output, label, weight=(1.0, 1.0)):
    """output = (data [B,T,C], speed_stars [B] (unused), valid_interval [B,2] int)."""
    data, _speed_stars, valid_interval = output
    B, T, C = data.shape
    assert len(weight) == C

    # Tile sizes: batch on sublanes (multiple of 8), time on lanes (multiple of
    # 128). T is tiled on a trailing reduction axis so VMEM stays bounded.
    b_tile = min(_round_up(B, 8), 64)
    t_tile = min(_round_up(T, 128), 512)
    b_pad = _round_up(B, b_tile)
    t_pad = _round_up(T, t_tile)

    # Class-major layout [C, B, T]: layout plumbing in the wrapper so all
    # in-kernel work is lane-dense. Data keeps its native dtype (no f32 cast).
    x = jnp.transpose(data, (2, 0, 1))
    x = jnp.pad(x, ((0, 0), (0, b_pad - B), (0, t_pad - T)))
    y = jnp.pad(label.astype(jnp.int32), ((0, b_pad - B), (0, t_pad - T)))
    vi = jnp.pad(valid_interval.astype(jnp.int32), ((0, b_pad - B), (0, 0)))

    kernel = functools.partial(
        _ce_kernel, weight=tuple(float(w) for w in weight))

    losses = pl.pallas_call(
        kernel,
        out_shape=jax.ShapeDtypeStruct((b_pad, 1), jnp.float32),
        grid_spec=pltpu.PrefetchScalarGridSpec(
            num_scalar_prefetch=0,
            grid=(b_pad // b_tile, t_pad // t_tile),   # reduction (T) axis last
            in_specs=[
                pl.BlockSpec((C, b_tile, t_tile), lambda bi, ti: (0, bi, ti)),
                pl.BlockSpec((b_tile, t_tile), lambda bi, ti: (bi, ti)),
                pl.BlockSpec((b_tile, 2), lambda bi, ti: (bi, 0)),
            ],
            out_specs=pl.BlockSpec((b_tile, 1), lambda bi, ti: (bi, 0)),
            scratch_shapes=[
                pltpu.VMEM((b_tile, 1), jnp.float32),   # num accumulator
                pltpu.VMEM((b_tile, 1), jnp.float32),   # den accumulator
            ],
        ),
        compiler_params=pltpu.CompilerParams(
            dimension_semantics=("parallel", "arbitrary"),
            vmem_limit_bytes=32 * 1024 * 1024,
        ),
    )(x, y, vi)

    # Padded batch rows (>= B) can be NaN (0/0); slice them off before the mean.
    return jnp.mean(losses[:B, 0])


def _reference_loss(data, valid_interval, label, weight):
    # plain-JAX replica of the PyTorch forward, for verification
    w = jnp.asarray(weight, jnp.float32)
    losses = []
    for b in range(data.shape[0]):
        s, e = int(valid_interval[b, 0]), int(valid_interval[b, 1])
        x = data[b, s:e].astype(jnp.float32)
        y = label[b, s:e].astype(jnp.int32)
        logp = jax.nn.log_softmax(x, axis=-1)
        nll = -jnp.take_along_axis(logp, y[:, None], axis=-1)[:, 0]
        wy = w[y]
        losses.append(jnp.sum(wy * nll) / jnp.sum(wy))
    return jnp.mean(jnp.stack(losses))


if __name__ == "__main__":
    key = jax.random.PRNGKey(0)
    k1, k2, k3, k4, k5 = jax.random.split(key, 5)

    # Test 1: tiny shapes matching the module's typical use (C = len(weight) = 2).
    B, T, C = 2, 16, 2
    data = jax.random.normal(k1, (B, T, C), dtype=jnp.float32)
    label = jax.random.randint(k2, (B, T), 0, C, dtype=jnp.int32)
    speed_stars = jax.random.normal(k3, (B,), dtype=jnp.float32)  # unused, as in PyTorch
    valid_interval = jnp.array([[2, 10], [0, 16]], dtype=jnp.int32)
    weight = (1.0, 1.0)

    loss = valid_interval_multi_pred_loss((data, speed_stars, valid_interval), label, weight)
    loss = jax.block_until_ready(loss)
    ref = _reference_loss(data, valid_interval, label, weight)
    assert jnp.allclose(loss, ref, rtol=1e-4, atol=1e-5), (loss, ref)

    # Test 2: exercises batch padding, multiple T tiles, and non-uniform weights.
    B2, T2, C2 = 5, 600, 2
    data2 = jax.random.normal(k4, (B2, T2, C2), dtype=jnp.float32)
    label2 = jax.random.randint(k5, (B2, T2), 0, C2, dtype=jnp.int32)
    speed2 = jnp.zeros((B2,), dtype=jnp.float32)  # unused
    vi2 = jnp.array([[0, 600], [10, 200], [37, 41], [100, 599], [250, 251]],
                    dtype=jnp.int32)
    weight2 = (0.25, 0.75)

    loss2 = valid_interval_multi_pred_loss((data2, speed2, vi2), label2, weight2)
    loss2 = jax.block_until_ready(loss2)
    ref2 = _reference_loss(data2, vi2, label2, weight2)
    assert jnp.allclose(loss2, ref2, rtol=1e-4, atol=1e-5), (loss2, ref2)

    print("KERNEL_OK")
</pallas_src>

<mosaic_0001>
module attributes {stable_mosaic.version = 11 : i64} {
  func.func @_ce_kernel(%arg0: i32, %arg1: i32, %arg2: memref<2x8x128xf32, #tpu.memory_space<vmem>>, %arg3: memref<8x128xi32, #tpu.memory_space<vmem>>, %arg4: memref<8x2xi32, #tpu.memory_space<vmem>>, %arg5: memref<8x1xf32, #tpu.memory_space<vmem>>, %arg6: memref<8x1xf32, #tpu.memory_space<vmem>>, %arg7: memref<8x1xf32, #tpu.memory_space<vmem>>) attributes {dimension_semantics = [#tpu.dimension_semantics<parallel>, #tpu.dimension_semantics<arbitrary>], iteration_bounds = array<i64: 1, 1>, scalar_prefetch = 0 : i64, scratch_operands = 2 : i64, tpu.core_type = #tpu.core_type<tc>, window_params = [{transform_indices = @transform_0, window_bounds = array<i64: 2, 8, 128>}, {transform_indices = @transform_1, window_bounds = array<i64: 8, 128>}, {transform_indices = @transform_2, window_bounds = array<i64: 8, 2>}, {transform_indices = @transform_3, window_bounds = array<i64: 8, 1>}]} {
    %c0_i32 = arith.constant 0 : i32
    %0 = arith.cmpi eq, %arg1, %c0_i32 : i32
    %1 = arith.extui %0 : i1 to i32
    %c0_i32_0 = arith.constant 0 : i32
    %2 = arith.cmpi ne, %1, %c0_i32_0 : i32
    scf.if %2 {
      %cst_27 = arith.constant 0.000000e+00 : f32
      %57 = vector.broadcast %cst_27 : f32 to vector<8x1xf32>
      %c0_28 = arith.constant 0 : index
      %c0_29 = arith.constant 0 : index
      %58 = vector.load %arg6[%c0_28, %c0_29] : memref<8x1xf32, #tpu.memory_space<vmem>>, vector<8x1xf32>
      tpu.vector_store %arg6[%c0_28, %c0_29], %57 {strides = array<i32>} : memref<8x1xf32, #tpu.memory_space<vmem>>, vector<8x1xf32>,
      %cst_30 = arith.constant 0.000000e+00 : f32
      %59 = vector.broadcast %cst_30 : f32 to vector<8x1xf32>
      %c0_31 = arith.constant 0 : index
      %c0_32 = arith.constant 0 : index
      %60 = vector.load %arg7[%c0_31, %c0_32] : memref<8x1xf32, #tpu.memory_space<vmem>>, vector<8x1xf32>
      tpu.vector_store %arg7[%c0_31, %c0_32], %59 {strides = array<i32>} : memref<8x1xf32, #tpu.memory_space<vmem>>, vector<8x1xf32>,
    } else {
    }
    %c0 = arith.constant 0 : index
    %c0_1 = arith.constant 0 : index
    %c0_2 = arith.constant 0 : index
    %3 = vector.load %arg2[%c0, %c0_1, %c0_2] : memref<2x8x128xf32, #tpu.memory_space<vmem>>, vector<1x8x128xf32>
    %4 = vector.shape_cast %3 : vector<1x8x128xf32> to vector<8x128xf32>
    %c1 = arith.constant 1 : index
    %c0_3 = arith.constant 0 : index
    %c0_4 = arith.constant 0 : index
    %5 = vector.load %arg2[%c1, %c0_3, %c0_4] : memref<2x8x128xf32, #tpu.memory_space<vmem>>, vector<1x8x128xf32>
    %6 = vector.shape_cast %5 : vector<1x8x128xf32> to vector<8x128xf32>
    %c0_5 = arith.constant 0 : index
    %c0_6 = arith.constant 0 : index
    %7 = vector.load %arg3[%c0_5, %c0_6] : memref<8x128xi32, #tpu.memory_space<vmem>>, vector<8x128xi32>
    %8 = arith.maximumf %4, %6 : vector<8x128xf32>
    %9 = arith.subf %4, %8 : vector<8x128xf32>
    %10 = math.exp %9 : vector<8x128xf32>
    %11 = arith.subf %6, %8 : vector<8x128xf32>
    %12 = math.exp %11 : vector<8x128xf32>
    %13 = arith.addf %10, %12 : vector<8x128xf32>
    %14 = math.log %13 : vector<8x128xf32>
    %15 = arith.addf %14, %8 : vector<8x128xf32>
    %cst = arith.constant 0.000000e+00 : f32
    %16 = vector.broadcast %cst : f32 to vector<8x128xf32>
    %cst_7 = arith.constant 0.000000e+00 : f32
    %17 = vector.broadcast %cst_7 : f32 to vector<8x128xf32>
    %c0_i32_8 = arith.constant 0 : i32
    %18 = vector.broadcast %c0_i32_8 : i32 to vector<8x128xi32>
    %19 = arith.cmpi eq, %7, %18 : vector<8x128xi32>
    %20 = arith.select %19, %4, %16 : vector<8x128xi1>, vector<8x128xf32>
    %cst_9 = arith.constant 1.000000e+00 : f32
    %21 = vector.broadcast %cst_9 : f32 to vector<8x128xf32>
    %22 = arith.select %19, %21, %17 : vector<8x128xi1>, vector<8x128xf32>
    %c1_i32 = arith.constant 1 : i32
    %23 = vector.broadcast %c1_i32 : i32 to vector<8x128xi32>
    %24 = arith.cmpi eq, %7, %23 : vector<8x128xi32>
    %25 = arith.select %24, %6, %20 : vector<8x128xi1>, vector<8x128xf32>
    %cst_10 = arith.constant 1.000000e+00 : f32
    %26 = vector.broadcast %cst_10 : f32 to vector<8x128xf32>
    %27 = arith.select %24, %26, %22 : vector<8x128xi1>, vector<8x128xf32>
    %28 = arith.subf %15, %25 : vector<8x128xf32>
    %c0_11 = arith.constant 0 : index
    %c0_12 = arith.constant 0 : index
    %29 = vector.load %arg4[%c0_11, %c0_12] : memref<8x2xi32, #tpu.memory_space<vmem>>, vector<8x1xi32>
    %c0_13 = arith.constant 0 : index
    %c1_14 = arith.constant 1 : index
    %30 = vector.load %arg4[%c0_13, %c1_14] : memref<8x2xi32, #tpu.memory_space<vmem>>, vector<8x1xi32>
    %31 = tpu.iota {dimensions = array<i32: 1>} : vector<8x128xi32>
    %c128_i32 = arith.constant 128 : i32
    %32 = arith.muli %arg1, %c128_i32 : i32
    %33 = vector.broadcast %32 : i32 to vector<8x128xi32>
    %34 = arith.addi %31, %33 : vector<8x128xi32>
    %35 = vector.broadcast %29 : vector<8x1xi32> to vector<8x128xi32>
    %36 = arith.cmpi sge, %34, %35 : vector<8x128xi32>
    %37 = vector.broadcast %30 : vector<8x1xi32> to vector<8x128xi32>
    %38 = arith.cmpi slt, %34, %37 : vector<8x128xi32>
    %39 = arith.andi %36, %38 : vector<8x128xi1>
    %40 = arith.extui %39 : vector<8x128xi1> to vector<8x128xi32>
    %41 = arith.sitofp %40 : vector<8x128xi32> to vector<8x128xf32>
    %42 = arith.mulf %41, %27 : vector<8x128xf32>
    %c0_15 = arith.constant 0 : index
    %c0_16 = arith.constant 0 : index
    %43 = vector.load %arg6[%c0_15, %c0_16] : memref<8x1xf32, #tpu.memory_space<vmem>>, vector<8x1xf32>
    %44 = arith.mulf %42, %28 : vector<8x128xf32>
    %cst_17 = arith.constant dense<0.000000e+00> : vector<8xf32>
    %45 = vector.multi_reduction <add>, %44, %cst_17 [1] : vector<8x128xf32> to vector<8xf32>
    %46 = vector.shape_cast %45 : vector<8xf32> to vector<8x1xf32>
    %47 = arith.addf %43, %46 : vector<8x1xf32>
    %c0_18 = arith.constant 0 : index
    %c0_19 = arith.constant 0 : index
    %48 = vector.load %arg6[%c0_18, %c0_19] : memref<8x1xf32, #tpu.memory_space<vmem>>, vector<8x1xf32>
    tpu.vector_store %arg6[%c0_18, %c0_19], %47 {strides = array<i32>} : memref<8x1xf32, #tpu.memory_space<vmem>>, vector<8x1xf32>,
    %c0_20 = arith.constant 0 : index
    %c0_21 = arith.constant 0 : index
    %49 = vector.load %arg7[%c0_20, %c0_21] : memref<8x1xf32, #tpu.memory_space<vmem>>, vector<8x1xf32>
    %cst_22 = arith.constant dense<0.000000e+00> : vector<8xf32>
    %50 = vector.multi_reduction <add>, %42, %cst_22 [1] : vector<8x128xf32> to vector<8xf32>
    %51 = vector.shape_cast %50 : vector<8xf32> to vector<8x1xf32>
    %52 = arith.addf %49, %51 : vector<8x1xf32>
    %c0_23 = arith.constant 0 : index
    %c0_24 = arith.constant 0 : index
    %53 = vector.load %arg7[%c0_23, %c0_24] : memref<8x1xf32, #tpu.memory_space<vmem>>, vector<8x1xf32>
    tpu.vector_store %arg7[%c0_23, %c0_24], %52 {strides = array<i32>} : memref<8x1xf32, #tpu.memory_space<vmem>>, vector<8x1xf32>,
    %c0_i32_25 = arith.constant 0 : i32
    %54 = arith.cmpi eq, %arg1, %c0_i32_25 : i32
    %55 = arith.extui %54 : i1 to i32
    %c0_i32_26 = arith.constant 0 : i32
    %56 = arith.cmpi ne, %55, %c0_i32_26 : i32
    scf.if %56 {
      %c0_27 = arith.constant 0 : index
      %c0_28 = arith.constant 0 : index
      %57 = vector.load %arg6[%c0_27, %c0_28] : memref<8x1xf32, #tpu.memory_space<vmem>>, vector<8x1xf32>
      %c0_29 = arith.constant 0 : index
      %c0_30 = arith.constant 0 : index
      %58 = vector.load %arg7[%c0_29, %c0_30] : memref<8x1xf32, #tpu.memory_space<vmem>>, vector<8x1xf32>
      %59 = arith.divf %57, %58 : vector<8x1xf32>
      %c0_31 = arith.constant 0 : index
      %c0_32 = arith.constant 0 : index
      %60 = vector.load %arg5[%c0_31, %c0_32] : memref<8x1xf32, #tpu.memory_space<vmem>>, vector<8x1xf32>
      tpu.vector_store %arg5[%c0_31, %c0_32], %59 {strides = array<i32>} : memref<8x1xf32, #tpu.memory_space<vmem>>, vector<8x1xf32>,
    } else {
    }
    return
  }
  func.func @transform_0(%arg0: i32, %arg1: i32) -> (i32, i32, i32) {
    %c0_i32 = arith.constant 0 : i32
    %c0_i32_0 = arith.constant 0 : i32
    return %c0_i32, %arg0, %arg1 : i32, i32, i32
  }
  func.func @transform_1(%arg0: i32, %arg1: i32) -> (i32, i32) {
    %c0_i32 = arith.constant 0 : i32
    return %arg0, %arg1 : i32, i32
  }
  func.func @transform_2(%arg0: i32, %arg1: i32) -> (i32, i32) {
    %c0_i32 = arith.constant 0 : i32
    %c0_i32_0 = arith.constant 0 : i32
    return %arg0, %c0_i32 : i32, i32
  }
  func.func @transform_3(%arg0: i32, %arg1: i32) -> (i32, i32) {
    %c0_i32 = arith.constant 0 : i32
    %c0_i32_0 = arith.constant 0 : i32
    return %arg0, %c0_i32 : i32, i32
  }
}

</mosaic_0001>

<llo_original>
// kernel: tpu_custom_call.1
$region0: #{tpu_custom_call.1}
  #allocation0 [shape = 'u32[]', space=smem, size = 0x4, offset = 0x4, fixed_abs, tag = 'smem constant byte address 0x4 - core index']
  #allocation1 [shape = 'u32[144,128]{1,0:T(1,128)}', space=vmem, size = 0x12000, scoped, tag = 'internal scratch']
  #allocation2 [shape = 'f32[8,1]{1,0:T(8,128)}', space=vmem, size = 0x1000, scoped, tag = 'scratch operand']
  #allocation3 [shape = 'f32[8,1]{1,0:T(8,128)}', space=vmem, size = 0x1000, scoped, tag = 'scratch operand']
  %s0 = inlined_call_operand.hbm [shape: f32[2,8,128], index: 0, kind: input, shape index: {}]
  %s1 = inlined_call_operand.vmem [shape: s32[8,128], index: 1, kind: input, shape index: {}]
  %s2 = inlined_call_operand.vmem [shape: s32[8,2], index: 2, kind: input, shape index: {}]
  %s3 = inlined_call_operand.vmem [shape: f32[8,1], index: 3, kind: output, shape index: {}]
  %s4 = sld [smem:[#allocation0]]
  $region34: #{tpu_custom_call.1} parent=0
    _
  %s6 = ssub.s32 1, %s4
  %s7 = scalar_select 0, %s6, %s4
  $region1: #{tpu_custom_call.1} parent=0
    #allocation4 [shape = 'u8[8192]{0}', space=vmem, size = 0x2000, scoped, tag = 'input window, operand 0, single buffered']
    #allocation5 [shape = 's32[1]{0}', space=sflag, size = 0x4, scoped, tag = 'scoped memory for tpu_custom_call.1']
    %8 = vsyncpa [#allocation5], 0
    // Predicated region
    $region2: #{tpu_custom_call.1} parent=1 // pred_check
      _
    $region3: #{tpu_custom_call.1} parent=1 // pred_check_branch
      %10 = sbr.rel (0) target = $region5
    $region4: #{tpu_custom_call.1} parent=1 // pred_region
      %s12 = ssub.s32 256, 256
      %13 = vsyncadd [#allocation5], %s12
      %s14 = sshll.u32 [#allocation4], 4
      %s15 = int_to_ptr.vmem [resolvable:$true] %s14
      %20 = dma.hbm_to_vmem [thread:$0]  %s0, 256, %s15, [#allocation5], 128, 128, 8
    $region5: #{tpu_custom_call.1} parent=1 // pred_fallthru
      _
    // Predicated region
    $region6: #{tpu_custom_call.1} parent=1 // pred_check
      _
    $region7: #{tpu_custom_call.1} parent=1 // pred_check_branch
      %22 = sbr.rel (0) target = $region9
    $region8: #{tpu_custom_call.1} parent=1 // pred_region
      _
    $region9: #{tpu_custom_call.1} parent=1 // pred_fallthru
      _
    // Predicated region
    $region10: #{tpu_custom_call.1} parent=1 // pred_check
      _
    $region11: #{tpu_custom_call.1} parent=1 // pred_check_branch
      %24 = sbr.rel (0) target = $region13
    $region12: #{tpu_custom_call.1} parent=1 // pred_region
      _
    $region13: #{tpu_custom_call.1} parent=1 // pred_fallthru
      _
    // Predicated region
    $region14: #{tpu_custom_call.1} parent=1 // pred_check
      _
    $region15: #{tpu_custom_call.1} parent=1 // pred_check_branch
      %26 = sbr.rel (0) target = $region17
    $region16: #{tpu_custom_call.1} parent=1 // pred_region
      %27 = dma.done [#allocation5], 256
    $region17: #{tpu_custom_call.1} parent=1 // pred_fallthru
      _
    %p28 = scmp.eq.s32.totalorder 0, 0
    // Predicated region
    $region18: #{tpu_custom_call.1} parent=1 // pred_check
      %p29 = pneg %p28
    $region19: #{tpu_custom_call.1} parent=1 // pred_check_branch
      %31 = sbr.rel (%p29) target = $region21
    $region20: #{tpu_custom_call.1} parent=1 // pred_region
      %vm32 = vcmask 7168
      %33 = vst.msk [vmem:[#allocation2] sm:$0xff] %vm32, 0.0
      %34 = vst.msk [vmem:[#allocation3] sm:$0xff] %vm32, 0.0
    $region21: #{tpu_custom_call.1} parent=1 // pred_fallthru
      _
    %v35 = vld [vmem:[#allocation4] sm:$0xff]
    %s36 = scalar_lea.vmem [#allocation4], 8
    %v37 = vld [vmem:[%s36] sm:$0xff]
    %v38 = vld [vmem:[%s1] sm:$0xff]
    %v39 = vmax.f32 %v35, %v37
    %v40 = vsub.f32 %v35, %v39
    %v41 = vmul.f32 %v40, 1.442695
    %v42 = vpow.pop %v41
    %v43 = vsub.f32 %v37, %v39
    %v44 = vmul.f32 %v43, 1.442695
    %v45 = vpow.pop %v44
    %v46 = vadd.f32 %v42, %v45
    %v47 = vlog2.pop %v46
    %v48 = vmul.f32 %v47, 0.6931472
    %v49 = vadd.f32 %v48, %v39
    %vm50 = vcmp.eq.s32.totalorder %v38, 0
    %v51 = vsel %vm50, %v35, 0.0
    %v52 = vsel %vm50, 1.0, 0.0
    %vm53 = vcmp.eq.s32.totalorder %v38, 1
    %v54 = vsel %vm53, %v37, %v51
    %v55 = vsel %vm53, 1.0, %v52
    %v56 = vsub.f32 %v49, %v54
    %v57 = vld [vmem:[%s2] sm:$0xff]
    %v58 = vlaneseq
    %v59 = vand.u32 %v58, 127
    %s60 = smul.u32 0, 128
    %v61 = vstv %s60
    %v62 = vadd.s32 %v59, %v61
    %63 = vset.pattern.permute.xlu0 0
    %64 = vperm.xlu0 %63, %v57
    %v65 = vpop.permute.xlu0 %64
    %vm66 = vcmp.ge.s32.totalorder %v62, %v65
    %67 = vset.pattern.permute.xlu0 1
    %68 = vperm.xlu0 %67, %v57
    %v69 = vpop.permute.xlu0 %68
    %vm70 = vcmp.lt.s32.totalorder %v62, %v69
    %vm71 = vmand %vm66, %vm70
    %v72 = vsel %vm71, 1, 0
    %v73 = vcvt.s32.f32 %v72
    %v74 = vmul.f32 %v73, %v55
    %v75 = vld [vmem:[#allocation2] sm:$0xff]
    %v76 = vmul.f32 %v74, %v56
    %77 = vadd.xlane.f32.xlu0 %v76
    %v78 = vpop.xlane.xlu0 %77
    %v79 = vadd.f32 %v75, %v78
    %vm80 = vcmask 7168
    %81 = vst.msk [vmem:[#allocation2] sm:$0xff] %vm80, %v79
    %v82 = vld [vmem:[#allocation3] sm:$0xff]
    %83 = vadd.xlane.f32.xlu0 %v74
    %v84 = vpop.xlane.xlu0 %83
    %v85 = vadd.f32 %v82, %v84
    %86 = vst.msk [vmem:[#allocation3] sm:$0xff] %vm80, %v85
    // Predicated region
    $region22: #{tpu_custom_call.1} parent=1 // pred_check
      %p87 = pneg %p28
    $region23: #{tpu_custom_call.1} parent=1 // pred_check_branch
      %89 = sbr.rel (%p87) target = $region25
    $region24: #{tpu_custom_call.1} parent=1 // pred_region
      %v90 = vld [vmem:[#allocation2] sm:$0xff]
      %v91 = vld [vmem:[#allocation3] sm:$0xff]
      %v92 = vrcp.pop %v91
      %v93 = vmul.f32 %v90, %v92
      %94 = vst.msk [vmem:[%s3] sm:$0xff] %vm80, %v93
    $region25: #{tpu_custom_call.1} parent=1 // pred_fallthru
      _
    // Predicated region
    $region26: #{tpu_custom_call.1} parent=1 // pred_check
      _
    $region27: #{tpu_custom_call.1} parent=1 // pred_check_branch
      %96 = sbr.rel (0) target = $region29
    $region28: #{tpu_custom_call.1} parent=1 // pred_region
      _
    $region29: #{tpu_custom_call.1} parent=1 // pred_fallthru
      _
    // Predicated region
    $region30: #{tpu_custom_call.1} parent=1 // pred_check
      _
    $region31: #{tpu_custom_call.1} parent=1 // pred_check_branch
      %98 = sbr.rel (0) target = $region33
    $region32: #{tpu_custom_call.1} parent=1 // pred_region
      _
    $region33: #{tpu_custom_call.1} parent=1 // pred_fallthru
      _
    %99 = vsyncpa [#allocation5], 1

</llo_original>
